<compile_context>
chip_gen: v5e
topology: v5e:2x2
jax: 0.10.0
libtpu: 0.0.40
codegen_flags: <defaults>
</compile_context>

<pallas_src>
import jax
import jax.numpy as jnp
from jax.experimental import pallas as pl
from jax.experimental.pallas import tpu as pltpu

# ---------------------------------------------------------------------------
# Problem configuration (small, consistent with the module's __init__)
#   layers = [H, H, H, H, DOUT]  ->  3 residual (ReZero) layers + final Linear
# ---------------------------------------------------------------------------
BATCH = 16
H = 32
DOUT = 16
NUM_RES = 3             # len(layers) - 2 residual layers; alphas has NUM_RES entries
NEG_SLOPE = 0.01        # torch.nn.LeakyReLU default


def fczero_kernel(alphas_ref, x_ref, wres_ref, bres_ref, wlast_ref, blast_ref, o_ref):
    """Whole batch in one invocation. All weights resident in VMEM; alphas in SMEM."""
    # Pull all per-layer scalars out of SMEM up front so the scalar loads are
    # not interleaved with the serial MXU dependency chain.
    alphas = [alphas_ref[i] for i in range(NUM_RES)]

    h = x_ref[...].astype(jnp.float32)                                   # (B, H)
    for i in range(NUM_RES):                                             # static unroll
        z = jnp.dot(h, wres_ref[i], preferred_element_type=jnp.float32)  # (B, H)
        z = z + bres_ref[i]                                              # (1, H) broadcast
        # LeakyReLU(z) == max(z, slope*z) for 0 < slope < 1; ReZero residual.
        h = h + alphas[i] * jnp.maximum(z, NEG_SLOPE * z)

    out = jnp.dot(h, wlast_ref[...], preferred_element_type=jnp.float32)  # (B, DOUT)
    out = out + blast_ref[...]                                            # (1, DOUT)
    o_ref[...] = out.astype(o_ref.dtype)


@jax.jit
def fczero_forward(h, t, alphas, w_res_t, b_res, w_last_t, b_last):
    """Pallas wrapper. `t` is accepted for API parity with the torch module (unused).

    No per-call parameter padding or post-kernel slicing: raw parameters go
    straight into pallas_call and the kernel emits the exact (B, DOUT) output.
    """
    del t
    B, _ = h.shape

    return pl.pallas_call(
        fczero_kernel,
        out_shape=jax.ShapeDtypeStruct((B, DOUT), h.dtype),
        in_specs=[
            # alphas: tiny per-layer scalars -> SMEM
            pl.BlockSpec(memory_space=pltpu.MemorySpace.SMEM),
            # activations: whole array resident in VMEM
            pl.BlockSpec(memory_space=pltpu.MemorySpace.VMEM),
            # stacked residual weights (NUM_RES, H, H)
            pl.BlockSpec(memory_space=pltpu.MemorySpace.VMEM),
            # stacked residual biases (NUM_RES, 1, H)
            pl.BlockSpec(memory_space=pltpu.MemorySpace.VMEM),
            # final-layer weight (H, DOUT), pre-transposed
            pl.BlockSpec(memory_space=pltpu.MemorySpace.VMEM),
            # final-layer bias (1, DOUT)
            pl.BlockSpec(memory_space=pltpu.MemorySpace.VMEM),
        ],
        out_specs=pl.BlockSpec(memory_space=pltpu.MemorySpace.VMEM),
    )(alphas, h, w_res_t, b_res, w_last_t, b_last)


def fczero_reference(h, alphas, w_res_t, b_res, w_last_t, b_last):
    """Pure-JAX reference of the same forward pass (for a sanity check)."""
    for i in range(NUM_RES):
        z = h @ w_res_t[i] + b_res[i]
        a = jnp.where(z >= 0, z, NEG_SLOPE * z)
        h = h + alphas[i] * a
    return h @ w_last_t + b_last


if __name__ == "__main__":
    key = jax.random.PRNGKey(0)
    k_h, k_w, k_b, k_wl, k_bl, k_a = jax.random.split(key, 6)

    # Inputs
    h = jax.random.normal(k_h, (BATCH, H), dtype=jnp.float32)
    t = jnp.float32(0.0)   # unused by the forward pass, kept for signature parity

    # Parameters (deterministic; shapes match FcZero([H, H, H, H, DOUT]).__init__)
    # torch Linear weight is (out, in); we store the transpose (in, out).
    w_res_t = jax.random.normal(k_w, (NUM_RES, H, H), dtype=jnp.float32) * 0.1
    b_res = jax.random.normal(k_b, (NUM_RES, 1, H), dtype=jnp.float32) * 0.1
    w_last_t = jax.random.normal(k_wl, (H, DOUT), dtype=jnp.float32) * 0.1
    b_last = jax.random.normal(k_bl, (1, DOUT), dtype=jnp.float32) * 0.1

    # Case 1: nonzero alphas so the residual/LeakyReLU path is numerically exercised.
    alphas = jax.random.normal(k_a, (NUM_RES,), dtype=jnp.float32) * 0.05
    out = fczero_forward(h, t, alphas, w_res_t, b_res, w_last_t, b_last)
    out = jax.block_until_ready(out)
    ref = fczero_reference(h, alphas, w_res_t, b_res, w_last_t, b_last)
    assert out.shape == (BATCH, DOUT)
    assert jnp.allclose(out, ref, atol=1e-5, rtol=1e-5), "mismatch vs JAX reference"

    # Case 2: zero alphas (the torch module's initialization) so the pure-skip
    # path is also validated, per the correctness review.
    alphas0 = jnp.zeros((NUM_RES,), dtype=jnp.float32)
    out0 = fczero_forward(h, t, alphas0, w_res_t, b_res, w_last_t, b_last)
    out0 = jax.block_until_ready(out0)
    ref0 = fczero_reference(h, alphas0, w_res_t, b_res, w_last_t, b_last)
    assert jnp.allclose(out0, ref0, atol=1e-5, rtol=1e-5), "mismatch (zero alphas)"

    print("KERNEL_OK")
</pallas_src>

<mosaic_0001>
module attributes {stable_mosaic.version = 11 : i64} {
  func.func @fczero_kernel(%arg0: memref<3xf32, #tpu.memory_space<smem>>, %arg1: memref<16x32xf32, #tpu.memory_space<vmem>>, %arg2: memref<3x32x32xf32, #tpu.memory_space<vmem>>, %arg3: memref<3x1x32xf32, #tpu.memory_space<vmem>>, %arg4: memref<32x16xf32, #tpu.memory_space<vmem>>, %arg5: memref<1x16xf32, #tpu.memory_space<vmem>>, %arg6: memref<16x16xf32, #tpu.memory_space<vmem>>) attributes {dimension_semantics = [], scalar_prefetch = 0 : i64, scratch_operands = 0 : i64, tpu.core_type = #tpu.core_type<tc>} {
    %c0 = arith.constant 0 : index
    %0 = memref.load %arg0[%c0] : memref<3xf32, #tpu.memory_space<smem>>
    %c1 = arith.constant 1 : index
    %1 = memref.load %arg0[%c1] : memref<3xf32, #tpu.memory_space<smem>>
    %c2 = arith.constant 2 : index
    %2 = memref.load %arg0[%c2] : memref<3xf32, #tpu.memory_space<smem>>
    %c0_0 = arith.constant 0 : index
    %c0_1 = arith.constant 0 : index
    %3 = vector.load %arg1[%c0_0, %c0_1] : memref<16x32xf32, #tpu.memory_space<vmem>>, vector<16x32xf32>
    %c0_2 = arith.constant 0 : index
    %c0_3 = arith.constant 0 : index
    %c0_4 = arith.constant 0 : index
    %4 = vector.load %arg2[%c0_2, %c0_3, %c0_4] : memref<3x32x32xf32, #tpu.memory_space<vmem>>, vector<1x32x32xf32>
    %5 = vector.shape_cast %4 : vector<1x32x32xf32> to vector<32x32xf32>
    %cst = arith.constant dense<0.000000e+00> : vector<16x32xf32>
    %6 = tpu.matmul %3, %5, %cst {dimension_numbers = #tpu.dot_dimension_numbers<[1], [0], [0], [1], [0, 0, 1, 1], [], []>} : vector<16x32xf32>, vector<32x32xf32>, vector<16x32xf32> -> vector<16x32xf32>
    %c0_5 = arith.constant 0 : index
    %c0_6 = arith.constant 0 : index
    %c0_7 = arith.constant 0 : index
    %7 = vector.load %arg3[%c0_5, %c0_6, %c0_7] : memref<3x1x32xf32, #tpu.memory_space<vmem>>, vector<1x1x32xf32>
    %8 = vector.shape_cast %7 : vector<1x1x32xf32> to vector<1x32xf32>
    %9 = vector.broadcast %8 : vector<1x32xf32> to vector<16x32xf32>
    %10 = arith.addf %6, %9 : vector<16x32xf32>
    %cst_8 = arith.constant 0.00999999977 : f32
    %11 = vector.broadcast %cst_8 : f32 to vector<16x32xf32>
    %12 = arith.mulf %11, %10 : vector<16x32xf32>
    %13 = arith.maximumf %10, %12 : vector<16x32xf32>
    %14 = vector.broadcast %0 : f32 to vector<16x32xf32>
    %15 = arith.mulf %14, %13 : vector<16x32xf32>
    %16 = arith.addf %3, %15 : vector<16x32xf32>
    %c1_9 = arith.constant 1 : index
    %c0_10 = arith.constant 0 : index
    %c0_11 = arith.constant 0 : index
    %17 = vector.load %arg2[%c1_9, %c0_10, %c0_11] : memref<3x32x32xf32, #tpu.memory_space<vmem>>, vector<1x32x32xf32>
    %18 = vector.shape_cast %17 : vector<1x32x32xf32> to vector<32x32xf32>
    %cst_12 = arith.constant dense<0.000000e+00> : vector<16x32xf32>
    %19 = tpu.matmul %16, %18, %cst_12 {dimension_numbers = #tpu.dot_dimension_numbers<[1], [0], [0], [1], [0, 0, 1, 1], [], []>} : vector<16x32xf32>, vector<32x32xf32>, vector<16x32xf32> -> vector<16x32xf32>
    %c1_13 = arith.constant 1 : index
    %c0_14 = arith.constant 0 : index
    %c0_15 = arith.constant 0 : index
    %20 = vector.load %arg3[%c1_13, %c0_14, %c0_15] : memref<3x1x32xf32, #tpu.memory_space<vmem>>, vector<1x1x32xf32>
    %21 = vector.shape_cast %20 : vector<1x1x32xf32> to vector<1x32xf32>
    %22 = vector.broadcast %21 : vector<1x32xf32> to vector<16x32xf32>
    %23 = arith.addf %19, %22 : vector<16x32xf32>
    %cst_16 = arith.constant 0.00999999977 : f32
    %24 = vector.broadcast %cst_16 : f32 to vector<16x32xf32>
    %25 = arith.mulf %24, %23 : vector<16x32xf32>
    %26 = arith.maximumf %23, %25 : vector<16x32xf32>
    %27 = vector.broadcast %1 : f32 to vector<16x32xf32>
    %28 = arith.mulf %27, %26 : vector<16x32xf32>
    %29 = arith.addf %16, %28 : vector<16x32xf32>
    %c2_17 = arith.constant 2 : index
    %c0_18 = arith.constant 0 : index
    %c0_19 = arith.constant 0 : index
    %30 = vector.load %arg2[%c2_17, %c0_18, %c0_19] : memref<3x32x32xf32, #tpu.memory_space<vmem>>, vector<1x32x32xf32>
    %31 = vector.shape_cast %30 : vector<1x32x32xf32> to vector<32x32xf32>
    %cst_20 = arith.constant dense<0.000000e+00> : vector<16x32xf32>
    %32 = tpu.matmul %29, %31, %cst_20 {dimension_numbers = #tpu.dot_dimension_numbers<[1], [0], [0], [1], [0, 0, 1, 1], [], []>} : vector<16x32xf32>, vector<32x32xf32>, vector<16x32xf32> -> vector<16x32xf32>
    %c2_21 = arith.constant 2 : index
    %c0_22 = arith.constant 0 : index
    %c0_23 = arith.constant 0 : index
    %33 = vector.load %arg3[%c2_21, %c0_22, %c0_23] : memref<3x1x32xf32, #tpu.memory_space<vmem>>, vector<1x1x32xf32>
    %34 = vector.shape_cast %33 : vector<1x1x32xf32> to vector<1x32xf32>
    %35 = vector.broadcast %34 : vector<1x32xf32> to vector<16x32xf32>
    %36 = arith.addf %32, %35 : vector<16x32xf32>
    %cst_24 = arith.constant 0.00999999977 : f32
    %37 = vector.broadcast %cst_24 : f32 to vector<16x32xf32>
    %38 = arith.mulf %37, %36 : vector<16x32xf32>
    %39 = arith.maximumf %36, %38 : vector<16x32xf32>
    %40 = vector.broadcast %2 : f32 to vector<16x32xf32>
    %41 = arith.mulf %40, %39 : vector<16x32xf32>
    %42 = arith.addf %29, %41 : vector<16x32xf32>
    %c0_25 = arith.constant 0 : index
    %c0_26 = arith.constant 0 : index
    %43 = vector.load %arg4[%c0_25, %c0_26] : memref<32x16xf32, #tpu.memory_space<vmem>>, vector<32x16xf32>
    %cst_27 = arith.constant dense<0.000000e+00> : vector<16x16xf32>
    %44 = tpu.matmul %42, %43, %cst_27 {dimension_numbers = #tpu.dot_dimension_numbers<[1], [0], [0], [1], [0, 0, 1, 1], [], []>} : vector<16x32xf32>, vector<32x16xf32>, vector<16x16xf32> -> vector<16x16xf32>
    %c0_28 = arith.constant 0 : index
    %c0_29 = arith.constant 0 : index
    %45 = vector.load %arg5[%c0_28, %c0_29] : memref<1x16xf32, #tpu.memory_space<vmem>>, vector<1x16xf32>
    %46 = vector.broadcast %45 : vector<1x16xf32> to vector<16x16xf32>
    %47 = arith.addf %44, %46 : vector<16x16xf32>
    %c0_30 = arith.constant 0 : index
    %c0_31 = arith.constant 0 : index
    %48 = vector.load %arg6[%c0_30, %c0_31] : memref<16x16xf32, #tpu.memory_space<vmem>>, vector<16x16xf32>
    tpu.vector_store %arg6[%c0_30, %c0_31], %47 {strides = array<i32>} : memref<16x16xf32, #tpu.memory_space<vmem>>, vector<16x16xf32>,
    return
  }
}

</mosaic_0001>

<llo_original>
// kernel: fczero_forward.1
$region0: #{fczero_forward.1}
  #allocation0 [shape = 'u32[]', space=smem, size = 0x4, offset = 0x4, fixed_abs, tag = 'smem constant byte address 0x4 - core index']
  #allocation1 [shape = 'u32[72,128]{1,0:T(1,128)}', space=vmem, size = 0x9000, scoped, tag = 'internal scratch']
  %s0 = inlined_call_operand.vmem [shape: f32[3], index: 0, kind: input, shape index: {}]
  %s1 = inlined_call_operand.vmem [shape: f32[16,32], index: 1, kind: input, shape index: {}]
  %s2 = inlined_call_operand.hbm [shape: f32[3,32,32], index: 2, kind: input, shape index: {}]
  %s3 = inlined_call_operand.vmem [shape: f32[3,1,32], index: 3, kind: input, shape index: {}]
  %s4 = inlined_call_operand.vmem [shape: f32[32,16], index: 4, kind: input, shape index: {}]
  %s5 = inlined_call_operand.vmem [shape: f32[1,16], index: 5, kind: input, shape index: {}]
  %s6 = inlined_call_operand.hbm [shape: f32[16,16], index: 6, kind: output, shape index: {}]
  %s7 = sld [smem:[#allocation0]]
  $region42: #{fczero_forward.1} parent=0
    _
  %s9 = ssub.s32 1, %s7
  %s10 = scalar_select 0, %s9, %s7
  $region1: #{fczero_forward.1} parent=0
    #allocation2 [shape = 'u8[512]{0}', space=smem, size = 0x200, scoped, tag = 'input window, operand 0, single buffered']
    #allocation3 [shape = 's32[1]{0}', space=sflag, size = 0x4, scoped, tag = 'scoped memory for fczero_forward.1']
    #allocation4 [shape = 's32[1]{0}', space=sflag, size = 0x4, scoped, tag = 'scoped memory for fczero_forward.1']
    #allocation5 [shape = 's32[1]{0}', space=sflag, size = 0x4, scoped, tag = 'scoped memory for fczero_forward.1']
    #allocation6 [shape = 'u8[49152]{0}', space=vmem, size = 0xc000, scoped, tag = 'input window, operand 2, single buffered']
    #allocation7 [shape = 'u8[8192]{0}', space=vmem, size = 0x2000, scoped, tag = 'output window, operand 0, single buffered']
    %11 = vsyncpa [#allocation5], 0
    %12 = vsyncpa [#allocation3], 0
    %13 = vsyncpa [#allocation4], 0
    // Predicated region
    $region2: #{fczero_forward.1} parent=1 // pred_check
      _
    $region3: #{fczero_forward.1} parent=1 // pred_check_branch
      %15 = sbr.rel (0) target = $region5
    $region4: #{fczero_forward.1} parent=1 // pred_region
      %17 = vsyncadd [#allocation5], 0
      %s19 = sshll.u32 %s0, 4
      %s20 = int_to_ptr.vmem [resolvable:$true] %s19
      %22 = dma.vmem_to_smem %s20, 16, [#allocation2], [#allocation5]
    $region5: #{fczero_forward.1} parent=1 // pred_fallthru
      _
    // Predicated region
    $region6: #{fczero_forward.1} parent=1 // pred_check
      _
    $region7: #{fczero_forward.1} parent=1 // pred_check_branch
      %24 = sbr.rel (0) target = $region9
    $region8: #{fczero_forward.1} parent=1 // pred_region
      _
    $region9: #{fczero_forward.1} parent=1 // pred_fallthru
      _
    // Predicated region
    $region10: #{fczero_forward.1} parent=1 // pred_check
      _
    $region11: #{fczero_forward.1} parent=1 // pred_check_branch
      %26 = sbr.rel (0) target = $region13
    $region12: #{fczero_forward.1} parent=1 // pred_region
      %28 = vsyncadd [#allocation3], 0
      %s29 = sshll.u32 %s2, 4
      %s30 = int_to_ptr.hbm [resolvable:$true] %s29
      %s31 = sshll.u32 [#allocation6], 4
      %s32 = int_to_ptr.vmem [resolvable:$true] %s31
      %37 = dma.hbm_to_vmem [thread:$0]  %s30, 1536, %s32, [#allocation3], 128, 128, 8
    $region13: #{fczero_forward.1} parent=1 // pred_fallthru
      _
    // Predicated region
    $region14: #{fczero_forward.1} parent=1 // pred_check
      _
    $region15: #{fczero_forward.1} parent=1 // pred_check_branch
      %39 = sbr.rel (0) target = $region17
    $region16: #{fczero_forward.1} parent=1 // pred_region
      _
    $region17: #{fczero_forward.1} parent=1 // pred_fallthru
      _
    // Predicated region
    $region18: #{fczero_forward.1} parent=1 // pred_check
      _
    $region19: #{fczero_forward.1} parent=1 // pred_check_branch
      %41 = sbr.rel (0) target = $region21
    $region20: #{fczero_forward.1} parent=1 // pred_region
      _
    $region21: #{fczero_forward.1} parent=1 // pred_fallthru
      _
    // Predicated region
    $region22: #{fczero_forward.1} parent=1 // pred_check
      _
    $region23: #{fczero_forward.1} parent=1 // pred_check_branch
      %43 = sbr.rel (0) target = $region25
    $region24: #{fczero_forward.1} parent=1 // pred_region
      _
    $region25: #{fczero_forward.1} parent=1 // pred_fallthru
      _
    // Predicated region
    $region26: #{fczero_forward.1} parent=1 // pred_check
      _
    $region27: #{fczero_forward.1} parent=1 // pred_check_branch
      %45 = sbr.rel (0) target = $region29
    $region28: #{fczero_forward.1} parent=1 // pred_region
      %47 = dma.done [#allocation5], 16
    $region29: #{fczero_forward.1} parent=1 // pred_fallthru
      _
    // Predicated region
    $region30: #{fczero_forward.1} parent=1 // pred_check
      _
    $region31: #{fczero_forward.1} parent=1 // pred_check_branch
      %49 = sbr.rel (0) target = $region33
    $region32: #{fczero_forward.1} parent=1 // pred_region
      %51 = dma.done [#allocation3], 1536
    $region33: #{fczero_forward.1} parent=1 // pred_fallthru
      _
    %52 = sfence
    %s53 = sld [smem:[#allocation2]]
    %s54 = sld [smem:[#allocation2 + $0x1]]
    %s55 = sld [smem:[#allocation2 + $0x2]]
    %v56 = vld [vmem:[%s1] sm:$0xff]
    %v57 = vld [vmem:[%s1 + $0x8] sm:$0xff]
    %v58 = vld [vmem:[#allocation6] sm:$0xff]
    %v59 = vld [vmem:[#allocation6 + $0x8] sm:$0xff]
    %v60 = vld [vmem:[#allocation6 + $0x10] sm:$0xff]
    %v61 = vld [vmem:[#allocation6 + $0x18] sm:$0xff]
    %v62 = vld [vmem:[%s3] sm:$0x1]
    %v64 = vperm.slane %v62, 0
    %vm66 = vcmask 261120
    %v68 = vsel %vm66, %v56, 0
    %v71 = vsel %vm66, %v57, 0
    %73 = vmatpush.msra.mxu0 0.0
    %74 = vmatpush.msra.mxu0 0.0
    %75 = vmatpush.msra.mxu0 0.0
    %76 = vmatpush.msra.mxu0 0.0
    %77 = vmatpush.msra.mxu0 0.0
    %78 = vmatpush.msra.mxu0 0.0
    %79 = vmatpush.msra.mxu0 0.0
    %80 = vmatpush.msra.mxu0 0.0
    %81 = vmatpush.msra.mxu0 0.0
    %82 = vmatpush.msra.mxu0 0.0
    %83 = vmatpush.msra.mxu0 0.0
    %84 = vmatpush.msra.mxu0 0.0
    %85 = vmatpush.msra.mxu0 %v61
    %86 = vmatpush.msra.mxu0 %v60
    %87 = vmatpush.msra.mxu0 %v59
    %88 = vmatpush.msra.mxu0 %v58
    %89 = vmatmul.f32.gmra.mxu0 %v68
    %v90 = vpop.f32.mrf.mxu0
    %v91 = vadd.f32 %v64, %v90
    %92 = vmatmul.f32.gmra.mxu0 %v71
    %v93 = vpop.f32.mrf.mxu0
    %v94 = vadd.f32 %v64, %v93
    %95 = vdwg.mxu0
    %v96 = vmul.f32 %v91, 0.01
    %v97 = vmul.f32 %v94, 0.01
    %v98 = vmax.f32 %v91, %v96
    %v99 = vmax.f32 %v94, %v97
    %v100 = vstv %s53
    %v101 = vmul.f32 %v100, %v98
    %v102 = vmul.f32 %v100, %v99
    %v103 = vadd.f32 %v56, %v101
    %v104 = vadd.f32 %v57, %v102
    %s105 = scalar_lea.vmem [#allocation6], 32
    %v106 = vld [vmem:[%s105] sm:$0xff]
    %v107 = vld [vmem:[%s105 + $0x8] sm:$0xff]
    %v108 = vld [vmem:[%s105 + $0x10] sm:$0xff]
    %v109 = vld [vmem:[%s105 + $0x18] sm:$0xff]
    %s110 = scalar_lea.vmem %s3, 1
    %v111 = vld [vmem:[%s110] sm:$0x1]
    %v113 = vperm.slane %v111, 0
    %v116 = vsel %vm66, %v103, 0
    %v119 = vsel %vm66, %v104, 0
    %121 = vmatpush.msra.mxu0 0.0
    %122 = vmatpush.msra.mxu0 0.0
    %123 = vmatpush.msra.mxu0 0.0
    %124 = vmatpush.msra.mxu0 0.0
    %125 = vmatpush.msra.mxu0 0.0
    %126 = vmatpush.msra.mxu0 0.0
    %127 = vmatpush.msra.mxu0 0.0
    %128 = vmatpush.msra.mxu0 0.0
    %129 = vmatpush.msra.mxu0 0.0
    %130 = vmatpush.msra.mxu0 0.0
    %131 = vmatpush.msra.mxu0 0.0
    %132 = vmatpush.msra.mxu0 0.0
    %133 = vmatpush.msra.mxu0 %v109
    %134 = vmatpush.msra.mxu0 %v108
    %135 = vmatpush.msra.mxu0 %v107
    %136 = vmatpush.msra.mxu0 %v106
    %137 = vmatmul.f32.gmra.mxu0 %v116
    %v138 = vpop.f32.mrf.mxu0
    %v139 = vadd.f32 %v113, %v138
    %140 = vmatmul.f32.gmra.mxu0 %v119
    %v141 = vpop.f32.mrf.mxu0
    %v142 = vadd.f32 %v113, %v141
    %143 = vdwg.mxu0
    %v144 = vmul.f32 %v139, 0.01
    %v145 = vmul.f32 %v142, 0.01
    %v146 = vmax.f32 %v139, %v144
    %v147 = vmax.f32 %v142, %v145
    %v148 = vstv %s54
    %v149 = vmul.f32 %v148, %v146
    %v150 = vmul.f32 %v148, %v147
    %v151 = vadd.f32 %v103, %v149
    %v152 = vadd.f32 %v104, %v150
    %s153 = scalar_lea.vmem [#allocation6], 64
    %v154 = vld [vmem:[%s153] sm:$0xff]
    %v155 = vld [vmem:[%s153 + $0x8] sm:$0xff]
    %v156 = vld [vmem:[%s153 + $0x10] sm:$0xff]
    %v157 = vld [vmem:[%s153 + $0x18] sm:$0xff]
    %s158 = scalar_lea.vmem %s3, 2
    %v159 = vld [vmem:[%s158] sm:$0x1]
    %v161 = vperm.slane %v159, 0
    %v164 = vsel %vm66, %v151, 0
    %v167 = vsel %vm66, %v152, 0
    %169 = vmatpush.msra.mxu0 0.0
    %170 = vmatpush.msra.mxu0 0.0
    %171 = vmatpush.msra.mxu0 0.0
    %172 = vmatpush.msra.mxu0 0.0
    %173 = vmatpush.msra.mxu0 0.0
    %174 = vmatpush.msra.mxu0 0.0
    %175 = vmatpush.msra.mxu0 0.0
    %176 = vmatpush.msra.mxu0 0.0
    %177 = vmatpush.msra.mxu0 0.0
    %178 = vmatpush.msra.mxu0 0.0
    %179 = vmatpush.msra.mxu0 0.0
    %180 = vmatpush.msra.mxu0 0.0
    %181 = vmatpush.msra.mxu0 %v157
    %182 = vmatpush.msra.mxu0 %v156
    %183 = vmatpush.msra.mxu0 %v155
    %184 = vmatpush.msra.mxu0 %v154
    %185 = vmatmul.f32.gmra.mxu0 %v164
    %v186 = vpop.f32.mrf.mxu0
    %v187 = vadd.f32 %v161, %v186
    %188 = vmatmul.f32.gmra.mxu0 %v167
    %v189 = vpop.f32.mrf.mxu0
    %v190 = vadd.f32 %v161, %v189
    %191 = vdwg.mxu0
    %v192 = vmul.f32 %v187, 0.01
    %v193 = vmul.f32 %v190, 0.01
    %v194 = vmax.f32 %v187, %v192
    %v195 = vmax.f32 %v190, %v193
    %v196 = vstv %s55
    %v197 = vmul.f32 %v196, %v194
    %v198 = vmul.f32 %v196, %v195
    %v199 = vadd.f32 %v151, %v197
    %v200 = vadd.f32 %v152, %v198
    %v201 = vld [vmem:[%s4] sm:$0xff]
    %v202 = vld [vmem:[%s4 + $0x8] sm:$0xff]
    %v203 = vld [vmem:[%s4 + $0x10] sm:$0xff]
    %v204 = vld [vmem:[%s4 + $0x18] sm:$0xff]
    %v205 = vld [vmem:[%s5] sm:$0x1]
    %v207 = vperm.slane %v205, 0
    %v210 = vsel %vm66, %v199, 0
    %v213 = vsel %vm66, %v200, 0
    %215 = vmatpush.msra.mxu0 0.0
    %216 = vmatpush.msra.mxu0 0.0
    %217 = vmatpush.msra.mxu0 0.0
    %218 = vmatpush.msra.mxu0 0.0
    %219 = vmatpush.msra.mxu0 0.0
    %220 = vmatpush.msra.mxu0 0.0
    %221 = vmatpush.msra.mxu0 0.0
    %222 = vmatpush.msra.mxu0 0.0
    %223 = vmatpush.msra.mxu0 0.0
    %224 = vmatpush.msra.mxu0 0.0
    %225 = vmatpush.msra.mxu0 0.0
    %226 = vmatpush.msra.mxu0 0.0
    %227 = vmatpush.msra.mxu0 %v204
    %228 = vmatpush.msra.mxu0 %v203
    %229 = vmatpush.msra.mxu0 %v202
    %230 = vmatpush.msra.mxu0 %v201
    %231 = vmatmul.f32.gmra.mxu0 %v210
    %v232 = vpop.f32.mrf.mxu0
    %v233 = vadd.f32 %v207, %v232
    %234 = vmatmul.f32.gmra.mxu0 %v213
    %v235 = vpop.f32.mrf.mxu0
    %v236 = vadd.f32 %v207, %v235
    %237 = vdwg.mxu0
    %vm238 = vcmask 130048
    %239 = vst.msk [vmem:[#allocation7] sm:$0xff] %vm238, %v233
    %240 = vst.msk [vmem:[#allocation7 + $0x8] sm:$0xff] %vm238, %v236
    // Predicated region
    $region34: #{fczero_forward.1} parent=1 // pred_check
      _
    $region35: #{fczero_forward.1} parent=1 // pred_check_branch
      %242 = sbr.rel (0) target = $region37
    $region36: #{fczero_forward.1} parent=1 // pred_region
      %244 = vsyncadd [#allocation4], 0
      %s245 = sshll.u32 [#allocation7], 4
      %s246 = int_to_ptr.vmem [resolvable:$true] %s245
      %s247 = sshll.u32 %s6, 4
      %s248 = int_to_ptr.hbm [resolvable:$true] %s247
      %253 = dma.vmem_to_hbm [thread:$0]  %s246, 256, %s248, [#allocation4], 128, 128, 8
    $region37: #{fczero_forward.1} parent=1 // pred_fallthru
      _
    // Predicated region
    $region38: #{fczero_forward.1} parent=1 // pred_check
      _
    $region39: #{fczero_forward.1} parent=1 // pred_check_branch
      %255 = sbr.rel (0) target = $region41
    $region40: #{fczero_forward.1} parent=1 // pred_region
      %257 = dma.done [#allocation4], 256
    $region41: #{fczero_forward.1} parent=1 // pred_fallthru
      _
    %258 = vsyncpa [#allocation3], 1
    %259 = vsyncpa [#allocation4], 1
    %260 = vsyncpa [#allocation5], 1

</llo_original>
